<compile_context>
chip_gen: v7x
topology: tpu7x:2x2x1
jax: 0.10.0
libtpu: 0.0.40
codegen_flags: <defaults>
</compile_context>

<pallas_src>
import jax
import jax.numpy as jnp
from jax.experimental import pallas as pl
from jax.experimental.pallas import tpu as pltpu


def _custom_activation_kernel(x_ref, o_ref):
    # Elementwise hot path: 3 * tanh(x). tanh lowers to the EUP (its own
    # bundle slot), the multiply to the VPU; the kernel is HBM-bandwidth bound.
    o_ref[...] = 3.0 * jnp.tanh(x_ref[...])


# Lane (last-dim) widths to try, widest first. Wide lane-dense slabs turn
# narrow/masked vst patterns into full unmasked stores and make each pipeline
# step move MBs instead of KBs.
_LANE_CANDIDATES = (2048, 1024, 512, 256, 128)

# ~4 MiB per block -> in+out double-buffered = ~16 MiB of VMEM, which fits
# every generation (v5e/v6e/v7x) once vmem_limit_bytes is raised to 32 MiB.
_TARGET_BLOCK_BYTES = 4 * 1024 * 1024


def custom_activation(x: jax.Array) -> jax.Array:
    """Applies 3.0 * tanh(x) elementwise via a Pallas TPU kernel.

    Flattens x to a lane-dense 2D slab (rows, W) with W a wide multiple of 128
    that divides x.size when possible (no padding, no final slice), and tiles
    it in multi-MiB blocks.
    """
    orig_shape = x.shape
    orig_dtype = x.dtype
    n = x.size
    itemsize = jnp.dtype(orig_dtype).itemsize

    # Pick the widest lane dim that divides n exactly (no padding needed);
    # otherwise fall back to 128 lanes + tail padding.
    lanes = None
    for cand in _LANE_CANDIDATES:
        if n % cand == 0:
            lanes = cand
            break
    needs_pad = lanes is None
    if needs_pad:
        lanes = 128

    rows = pl.cdiv(n, lanes)
    padded_n = rows * lanes

    x_flat = jnp.ravel(x)
    if needs_pad and padded_n != n:
        x_flat = jnp.pad(x_flat, (0, padded_n - n))
    x2d = x_flat.reshape(rows, lanes)

    # Multi-MiB blocks: tile_rows is a multiple of 8 (sublane tiling) unless a
    # single block covers the whole row extent. Partial last blocks are
    # handled by Pallas via masked writes, so no row padding is needed.
    rows_per_block = max(8, (_TARGET_BLOCK_BYTES // (lanes * itemsize)) // 8 * 8)
    tile_rows = rows if rows <= rows_per_block else rows_per_block
    grid = (pl.cdiv(rows, tile_rows),)

    out2d = pl.pallas_call(
        _custom_activation_kernel,
        out_shape=jax.ShapeDtypeStruct((rows, lanes), orig_dtype),
        grid_spec=pltpu.PrefetchScalarGridSpec(
            num_scalar_prefetch=0,
            grid=grid,
            in_specs=[pl.BlockSpec((tile_rows, lanes), lambda i: (i, 0))],
            out_specs=pl.BlockSpec((tile_rows, lanes), lambda i: (i, 0)),
        ),
        compiler_params=pltpu.CompilerParams(
            # Single grid axis is embarrassingly parallel: lets v7x shard it
            # across its 2 TensorCores; harmless on v5e/v6e.
            dimension_semantics=("parallel",),
            # Headroom for the 4x ~4 MiB pipelined buffers on all generations
            # (v5e's default scoped VMEM limit is only 16 MiB).
            vmem_limit_bytes=32 * 1024 * 1024,
        ),
        # Elementwise op with matching in/out shape+dtype: allow HBM reuse.
        input_output_aliases={0: 0},
        cost_estimate=pl.CostEstimate(
            flops=padded_n,
            transcendentals=padded_n,
            bytes_accessed=2 * padded_n * itemsize,
        ),
    )(x2d)

    if needs_pad:
        return out2d.reshape(-1)[:n].reshape(orig_shape)
    return out2d.reshape(orig_shape)


if __name__ == "__main__":
    key = jax.random.PRNGKey(0)
    # Shape consistent with a typical NCHW activation input.
    x = jax.random.normal(key, (2, 4, 16, 16), dtype=jnp.float32)

    # Reference computed first (plain JAX).
    y_ref = 3.0 * jnp.tanh(x)

    fn = jax.jit(custom_activation)
    y = jax.block_until_ready(fn(x))

    assert y.shape == x.shape and y.dtype == x.dtype
    assert jnp.allclose(y, y_ref, atol=1e-6, rtol=1e-6)

    print("KERNEL_OK")
</pallas_src>

<mosaic_0001>
module attributes {stable_mosaic.version = 11 : i64} {
  func.func @_custom_activation_kernel(%arg0: i32, %arg1: memref<1x2048xf32, #tpu.memory_space<vmem>>, %arg2: memref<1x2048xf32, #tpu.memory_space<vmem>>) attributes {dimension_semantics = [#tpu.dimension_semantics<parallel>], iteration_bounds = array<i64: 1>, scalar_prefetch = 0 : i64, scratch_operands = 0 : i64, tpu.core_type = #tpu.core_type<tc>, window_params = [{transform_indices = @transform_0, window_bounds = array<i64: 1, 2048>}, {transform_indices = @transform_1, window_bounds = array<i64: 1, 2048>}]} {
    %c0 = arith.constant 0 : index
    %c0_0 = arith.constant 0 : index
    %0 = vector.load %arg1[%c0, %c0_0] : memref<1x2048xf32, #tpu.memory_space<vmem>>, vector<1x2048xf32>
    %1 = math.tanh %0 : vector<1x2048xf32>
    %cst = arith.constant 3.000000e+00 : f32
    %2 = vector.broadcast %cst : f32 to vector<1x2048xf32>
    %3 = arith.mulf %2, %1 : vector<1x2048xf32>
    %c0_1 = arith.constant 0 : index
    %c0_2 = arith.constant 0 : index
    %4 = vector.load %arg2[%c0_1, %c0_2] : memref<1x2048xf32, #tpu.memory_space<vmem>>, vector<1x2048xf32>
    tpu.vector_store %arg2[%c0_1, %c0_2], %3 {strides = array<i32>} : memref<1x2048xf32, #tpu.memory_space<vmem>>, vector<1x2048xf32>,
    return
  }
  func.func @transform_0(%arg0: i32) -> (i32, i32) {
    %c0_i32 = arith.constant 0 : i32
    %c0_i32_0 = arith.constant 0 : i32
    return %arg0, %c0_i32 : i32, i32
  }
  func.func @transform_1(%arg0: i32) -> (i32, i32) {
    %c0_i32 = arith.constant 0 : i32
    %c0_i32_0 = arith.constant 0 : i32
    return %arg0, %c0_i32 : i32, i32
  }
}

</mosaic_0001>

<llo_original>
// kernel: custom_activation.1
$region0: #{custom_activation.1}
  #allocation0 [shape = 'u32[]', space=smem, size = 0x4, offset = 0x4, fixed_abs, tag = 'smem constant byte address 0x4 - core index']
  #allocation1 [shape = 'u32[144,128]{1,0:T(1,128)}', space=vmem, size = 0x12000, scoped, tag = 'internal scratch']
  %s0 = inlined_call_operand.vmem [shape: f32[1,2048], index: 0, kind: input, shape index: {}, may-alias: {0,1}]
  %s1 = inlined_call_operand.vmem [shape: f32[1,2048], index: 1, kind: output, shape index: {}, may-alias: {0,1}]
  %s2 = sld [smem:[#allocation0]]
  $region14: #{custom_activation.1} parent=0
    _
  %s4 = ssub.s32 1, %s2
  %s5 = scalar_select 0, %s4, %s2
  // Predicated region
  $region2: #{custom_activation.1} parent=0 // pred_check
    _
  $region3: #{custom_activation.1} parent=0 // pred_check_branch
    %7 = sbr.rel (0) target = $region5
  $region4: #{custom_activation.1} parent=0 // pred_region
    _
  $region5: #{custom_activation.1} parent=0 // pred_fallthru
    _
  %v8 = vld [vmem:[%s0] sm:$0xff]
  %v9 = vld [vmem:[%s0 + $0x8] sm:$0xff]
  %v10 = vtanh.pop %v8
  %v11 = vtanh.pop %v9
  %v12 = vmul.f32 %v10, 3.0
  %v13 = vmul.f32 %v11, 3.0
  %14 = vst [vmem:[%s1] sm:$0xff] %v12
  %15 = vst [vmem:[%s1 + $0x8] sm:$0xff] %v13
  // Predicated region
  $region6: #{custom_activation.1} parent=0 // pred_check
    _
  $region7: #{custom_activation.1} parent=0 // pred_check_branch
    %17 = sbr.rel (0) target = $region9
  $region8: #{custom_activation.1} parent=0 // pred_region
    _
  $region9: #{custom_activation.1} parent=0 // pred_fallthru
    _
  // Predicated region
  $region10: #{custom_activation.1} parent=0 // pred_check
    _
  $region11: #{custom_activation.1} parent=0 // pred_check_branch
    %19 = sbr.rel (0) target = $region13
  $region12: #{custom_activation.1} parent=0 // pred_region
    _
  $region13: #{custom_activation.1} parent=0 // pred_fallthru
    _

</llo_original>
